<compile_context>
chip_gen: v5e
topology: v5e:2x2
jax: 0.10.0
libtpu: 0.0.40
codegen_flags: <defaults>
</compile_context>

<pallas_src>
import functools

import jax
import jax.numpy as jnp
from jax.experimental import pallas as pl
from jax.experimental.pallas import tpu as pltpu

BCE_WEIGHT = 0.5
DICE_WEIGHT = 0.5
SMOOTH = 0.001
LANES = 128
SUBLANES = 8
# Cap on the streamed, double-buffered working set: 2 inputs x 2 buffers.
_WORKING_SET_BYTES = 16 * 1024 * 1024
# Neutral pad logit: softplus(-100) ~ 0 and sigmoid(-100) ~ 0 in f32, so padded
# elements contribute ~0 to every accumulator (with t padded to 0).
_PAD_LOGIT = -100.0


def _cdiv(a, b):
    return -(-a // b)


def _round_up(x, m):
    return _cdiv(x, m) * m


def _tensorcores_per_chip():
    """Best-effort: 2 on v7x-style chips (2 TCs/chip), 1 on v5e/v6e."""
    try:
        kind = jax.devices()[0].device_kind.lower()
    except Exception:
        return 1
    return 2 if "v7" in kind else 1


def _bce_dice_kernel(x_ref, t_ref, out_ref, bce_acc, inter_acc, den_acc, *,
                     multi_core, blocks_per_part, num_blocks, rows, row_tile,
                     needs_row_mask, needs_block_gate):
    if multi_core:
        part = pl.program_id(0)
        i = pl.program_id(1)
        blk = part * blocks_per_part + i
        last_i = pl.num_programs(1) - 1
    else:
        i = pl.program_id(0)
        blk = i
        last_i = pl.num_programs(0) - 1

    @pl.when(i == 0)
    def _init():
        bce_acc[...] = jnp.zeros_like(bce_acc)
        inter_acc[...] = jnp.zeros_like(inter_acc)
        den_acc[...] = jnp.zeros_like(den_acc)

    x = x_ref[...].astype(jnp.float32)
    t = t_ref[...].astype(jnp.float32)

    # Logits-form BCE: softplus(x) - x*t, with softplus(x) = max(x,0) + log1p(e),
    # e = exp(-|x|).  Numerically stable; identical (up to f32 rounding) to
    # torch's BCELoss(sigmoid(x), t) for |x| <~ 100.
    e = jnp.exp(-jnp.abs(x))
    log1pe = jnp.log1p(e)
    bce_elem = jnp.maximum(x, 0.0) - x * t + log1pe

    # sigmoid(x) reusing the same exp: 1/(1+e) for x>=0, e/(1+e) for x<0.
    # Exact divide keeps rtol=1e-5 parity with the reference (approx recip
    # would relax this to ~1e-4).
    inv = 1.0 / (1.0 + e)
    p = jnp.where(x >= 0.0, inv, e * inv)
    pt = p * t
    pplus = p + t

    def fold(v):
        # (row_tile, 128) -> (8, 128) with plain VPU adds (no XLU per step).
        return jnp.sum(v.reshape(row_tile // SUBLANES, SUBLANES, LANES), axis=0)

    def accumulate(bce_v, pt_v, pplus_v):
        bce_acc[...] += fold(bce_v)
        inter_acc[...] += fold(pt_v)
        den_acc[...] += fold(pplus_v)

    if needs_row_mask:
        # Mask cost is paid ONLY on the (single) partial last block; bulk blocks
        # take the unmasked path.  Out-of-range blocks (blk >= num_blocks, which
        # can only occur in the multi-core split) fall through both branches.
        @pl.when(blk < num_blocks - 1)
        def _bulk():
            accumulate(bce_elem, pt, pplus)

        @pl.when(blk == num_blocks - 1)
        def _tail():
            ridx = (jax.lax.broadcasted_iota(jnp.int32, (row_tile, LANES), 0)
                    + blk * row_tile)
            rv = ridx < rows
            # Select (not multiply): garbage/NaN in the unspecified tail of the
            # partial VMEM block must not poison the accumulators.
            accumulate(jnp.where(rv, bce_elem, 0.0),
                       jnp.where(rv, pt, 0.0),
                       jnp.where(rv, pplus, 0.0))
    elif needs_block_gate:
        @pl.when(blk < num_blocks)
        def _gated():
            accumulate(bce_elem, pt, pplus)
    else:
        accumulate(bce_elem, pt, pplus)

    @pl.when(i == last_i)
    def _finalize():
        out_ref[0, 0, :, :] = bce_acc[...]
        out_ref[0, 1, :, :] = inter_acc[...]
        out_ref[0, 2, :, :] = den_acc[...]


def bce_dice_loss(inputs, target, *, row_tile=None, num_partitions=None):
    """inputs: raw logits (any shape/dtype), target: same shape, values in [0, 1].

    The wrapper preserves the incoming dtype, so callers on bandwidth-bound
    chips (v5e/v6e) can pass bf16 logits / targets to halve HBM traffic; all
    in-kernel math is f32.
    """
    n = int(inputs.size)
    rows = _cdiv(n, LANES)
    lane_pad = rows * LANES - n

    x_flat = jnp.ravel(inputs)
    t_flat = jnp.ravel(target)
    if lane_pad:
        # Only when n % 128 != 0: pad with NEUTRAL values so the kernel never
        # needs a lane mask (padded elems contribute ~0 to every accumulator).
        x_flat = jnp.pad(x_flat, (0, lane_pad), constant_values=_PAD_LOGIT)
        t_flat = jnp.pad(t_flat, (0, lane_pad), constant_values=0.0)
    x2 = x_flat.reshape(rows, LANES)
    t2 = t_flat.reshape(rows, LANES)

    # Row tile from a working-set budget: 2 bufs x (x block + t block) <= 16 MiB.
    bytes_per_row = 2 * LANES * (x2.dtype.itemsize + t2.dtype.itemsize)
    cap_rows = max(SUBLANES,
                   (_WORKING_SET_BYTES // bytes_per_row) // SUBLANES * SUBLANES)
    if row_tile is None:
        row_tile = cap_rows
    row_tile = max(SUBLANES, min(_round_up(int(row_tile), SUBLANES), cap_rows))
    row_tile = min(row_tile, _round_up(rows, SUBLANES))

    num_blocks = _cdiv(rows, row_tile)
    needs_row_mask = (rows % row_tile) != 0   # partial last block, masked in-kernel

    nparts = _tensorcores_per_chip() if num_partitions is None else int(num_partitions)
    nparts = max(1, min(nparts, num_blocks))
    multi_core = nparts > 1

    if multi_core:
        bpp = _cdiv(num_blocks, nparts)
        grid = (nparts, bpp)
        in_map = lambda p, i: (jnp.minimum(p * bpp + i, num_blocks - 1), 0)
        out_map = lambda p, i: (p, 0, 0, 0)
        semantics = ("parallel", "arbitrary")
        needs_block_gate = (nparts * bpp) != num_blocks
    else:
        bpp = num_blocks
        grid = (num_blocks,)
        in_map = lambda i: (i, 0)
        out_map = lambda i: (0, 0, 0, 0)
        semantics = ("arbitrary",)
        needs_block_gate = False

    kernel = functools.partial(
        _bce_dice_kernel,
        multi_core=multi_core, blocks_per_part=bpp, num_blocks=num_blocks,
        rows=rows, row_tile=row_tile,
        needs_row_mask=needs_row_mask, needs_block_gate=needs_block_gate)

    parts = pl.pallas_call(
        kernel,
        out_shape=jax.ShapeDtypeStruct((nparts, 3, SUBLANES, LANES), jnp.float32),
        grid_spec=pltpu.PrefetchScalarGridSpec(
            num_scalar_prefetch=0,
            grid=grid,
            in_specs=[
                pl.BlockSpec((row_tile, LANES), in_map),
                pl.BlockSpec((row_tile, LANES), in_map),
            ],
            out_specs=pl.BlockSpec((1, 3, SUBLANES, LANES), out_map),
            scratch_shapes=[pltpu.VMEM((SUBLANES, LANES), jnp.float32)] * 3,
        ),
        compiler_params=pltpu.CompilerParams(
            dimension_semantics=semantics,
            vmem_limit_bytes=32 * 1024 * 1024),
    )(x2, t2)

    # Tiny final combine (3 * nparts * 1024 floats) done by XLA.
    bce_sum = jnp.sum(parts[:, 0])
    inter = jnp.sum(parts[:, 1])
    den = jnp.sum(parts[:, 2])
    bce_mean = bce_sum * (1.0 / float(n))
    dice = (2.0 * inter + SMOOTH) / (den + SMOOTH)
    return BCE_WEIGHT * bce_mean + DICE_WEIGHT * (1.0 - dice)


def _reference(inputs, target):
    # PyTorch-faithful: sigmoid + BCELoss (log clamped at -100, mean) + soft dice.
    p = jax.nn.sigmoid(inputs.astype(jnp.float32))
    t = target.astype(jnp.float32)
    bce = jnp.mean(-(t * jnp.maximum(jnp.log(p), -100.0)
                     + (1.0 - t) * jnp.maximum(jnp.log(1.0 - p), -100.0)))
    inter = jnp.sum(p * t)
    dice = (2.0 * inter + SMOOTH) / (jnp.sum(p) + jnp.sum(t) + SMOOTH)
    return bce * BCE_WEIGHT + (1.0 - dice) * DICE_WEIGHT


if __name__ == "__main__":
    key = jax.random.PRNGKey(0)
    k1, k2 = jax.random.split(key)
    # NCHW, as the PyTorch module would receive (segmentation logits + binary mask)
    x = jax.random.normal(k1, (2, 4, 16, 16), dtype=jnp.float32)
    t = (jax.random.uniform(k2, (2, 4, 16, 16)) > 0.5).astype(jnp.float32)

    loss = bce_dice_loss(x, t)
    loss = jax.block_until_ready(loss)

    ref = _reference(x, t)
    assert jnp.allclose(loss, ref, rtol=1e-5, atol=1e-5), (loss, ref)
    print("KERNEL_OK")
</pallas_src>

<mosaic_0001>
module attributes {stable_mosaic.version = 11 : i64} {
  func.func @_bce_dice_kernel(%arg0: i32, %arg1: memref<16x128xf32, #tpu.memory_space<vmem>>, %arg2: memref<16x128xf32, #tpu.memory_space<vmem>>, %arg3: memref<1x3x8x128xf32, #tpu.memory_space<vmem>>, %arg4: memref<8x128xf32, #tpu.memory_space<vmem>>, %arg5: memref<8x128xf32, #tpu.memory_space<vmem>>, %arg6: memref<8x128xf32, #tpu.memory_space<vmem>>) attributes {dimension_semantics = [#tpu.dimension_semantics<arbitrary>], iteration_bounds = array<i64: 1>, scalar_prefetch = 0 : i64, scratch_operands = 3 : i64, tpu.core_type = #tpu.core_type<tc>, window_params = [{transform_indices = @transform_0, window_bounds = array<i64: 16, 128>}, {transform_indices = @transform_1, window_bounds = array<i64: 16, 128>}, {pipeline_mode = #tpu.pipeline_mode<synchronous>, transform_indices = @transform_2, window_bounds = array<i64: 1, 3, 8, 128>}]} {
    %c0_i32 = arith.constant 0 : i32
    %0 = arith.cmpi eq, %arg0, %c0_i32 : i32
    %1 = arith.extui %0 : i1 to i32
    %c0_i32_0 = arith.constant 0 : i32
    %2 = arith.cmpi ne, %1, %c0_i32_0 : i32
    scf.if %2 {
      %cst_25 = arith.constant 0.000000e+00 : f32
      %43 = vector.broadcast %cst_25 : f32 to vector<8x128xf32>
      %c0_26 = arith.constant 0 : index
      %c0_27 = arith.constant 0 : index
      %44 = vector.load %arg4[%c0_26, %c0_27] : memref<8x128xf32, #tpu.memory_space<vmem>>, vector<8x128xf32>
      tpu.vector_store %arg4[%c0_26, %c0_27], %43 {strides = array<i32>} : memref<8x128xf32, #tpu.memory_space<vmem>>, vector<8x128xf32>,
      %cst_28 = arith.constant 0.000000e+00 : f32
      %45 = vector.broadcast %cst_28 : f32 to vector<8x128xf32>
      %c0_29 = arith.constant 0 : index
      %c0_30 = arith.constant 0 : index
      %46 = vector.load %arg5[%c0_29, %c0_30] : memref<8x128xf32, #tpu.memory_space<vmem>>, vector<8x128xf32>
      tpu.vector_store %arg5[%c0_29, %c0_30], %45 {strides = array<i32>} : memref<8x128xf32, #tpu.memory_space<vmem>>, vector<8x128xf32>,
      %cst_31 = arith.constant 0.000000e+00 : f32
      %47 = vector.broadcast %cst_31 : f32 to vector<8x128xf32>
      %c0_32 = arith.constant 0 : index
      %c0_33 = arith.constant 0 : index
      %48 = vector.load %arg6[%c0_32, %c0_33] : memref<8x128xf32, #tpu.memory_space<vmem>>, vector<8x128xf32>
      tpu.vector_store %arg6[%c0_32, %c0_33], %47 {strides = array<i32>} : memref<8x128xf32, #tpu.memory_space<vmem>>, vector<8x128xf32>,
    } else {
    }
    %c0 = arith.constant 0 : index
    %c0_1 = arith.constant 0 : index
    %3 = vector.load %arg1[%c0, %c0_1] : memref<16x128xf32, #tpu.memory_space<vmem>>, vector<16x128xf32>
    %c0_2 = arith.constant 0 : index
    %c0_3 = arith.constant 0 : index
    %4 = vector.load %arg2[%c0_2, %c0_3] : memref<16x128xf32, #tpu.memory_space<vmem>>, vector<16x128xf32>
    %5 = math.absf %3 : vector<16x128xf32>
    %cst = arith.constant 0.000000e+00 : f32
    %6 = vector.broadcast %cst : f32 to vector<16x128xf32>
    %7 = arith.subf %6, %5 : vector<16x128xf32>
    %8 = math.exp %7 : vector<16x128xf32>
    %9 = math.log1p %8 : vector<16x128xf32>
    %cst_4 = arith.constant 0.000000e+00 : f32
    %10 = vector.broadcast %cst_4 : f32 to vector<16x128xf32>
    %11 = arith.maximumf %3, %10 : vector<16x128xf32>
    %12 = arith.mulf %3, %4 : vector<16x128xf32>
    %13 = arith.subf %11, %12 : vector<16x128xf32>
    %14 = arith.addf %13, %9 : vector<16x128xf32>
    %cst_5 = arith.constant 1.000000e+00 : f32
    %15 = vector.broadcast %cst_5 : f32 to vector<16x128xf32>
    %16 = arith.addf %15, %8 : vector<16x128xf32>
    %cst_6 = arith.constant 1.000000e+00 : f32
    %17 = vector.broadcast %cst_6 : f32 to vector<16x128xf32>
    %18 = arith.divf %17, %16 : vector<16x128xf32>
    %cst_7 = arith.constant 0.000000e+00 : f32
    %19 = vector.broadcast %cst_7 : f32 to vector<16x128xf32>
    %20 = arith.cmpf oge, %3, %19 : vector<16x128xf32>
    %21 = arith.mulf %8, %18 : vector<16x128xf32>
    %22 = arith.select %20, %18, %21 : vector<16x128xi1>, vector<16x128xf32>
    %23 = arith.mulf %22, %4 : vector<16x128xf32>
    %24 = arith.addf %22, %4 : vector<16x128xf32>
    %c0_8 = arith.constant 0 : index
    %c0_9 = arith.constant 0 : index
    %25 = vector.load %arg4[%c0_8, %c0_9] : memref<8x128xf32, #tpu.memory_space<vmem>>, vector<8x128xf32>
    %26 = vector.shape_cast %14 : vector<16x128xf32> to vector<2x8x128xf32>
    %cst_10 = arith.constant dense<0.000000e+00> : vector<8x128xf32>
    %27 = vector.multi_reduction <add>, %26, %cst_10 [0] : vector<2x8x128xf32> to vector<8x128xf32>
    %28 = arith.addf %25, %27 : vector<8x128xf32>
    %c0_11 = arith.constant 0 : index
    %c0_12 = arith.constant 0 : index
    %29 = vector.load %arg4[%c0_11, %c0_12] : memref<8x128xf32, #tpu.memory_space<vmem>>, vector<8x128xf32>
    tpu.vector_store %arg4[%c0_11, %c0_12], %28 {strides = array<i32>} : memref<8x128xf32, #tpu.memory_space<vmem>>, vector<8x128xf32>,
    %c0_13 = arith.constant 0 : index
    %c0_14 = arith.constant 0 : index
    %30 = vector.load %arg5[%c0_13, %c0_14] : memref<8x128xf32, #tpu.memory_space<vmem>>, vector<8x128xf32>
    %31 = vector.shape_cast %23 : vector<16x128xf32> to vector<2x8x128xf32>
    %cst_15 = arith.constant dense<0.000000e+00> : vector<8x128xf32>
    %32 = vector.multi_reduction <add>, %31, %cst_15 [0] : vector<2x8x128xf32> to vector<8x128xf32>
    %33 = arith.addf %30, %32 : vector<8x128xf32>
    %c0_16 = arith.constant 0 : index
    %c0_17 = arith.constant 0 : index
    %34 = vector.load %arg5[%c0_16, %c0_17] : memref<8x128xf32, #tpu.memory_space<vmem>>, vector<8x128xf32>
    tpu.vector_store %arg5[%c0_16, %c0_17], %33 {strides = array<i32>} : memref<8x128xf32, #tpu.memory_space<vmem>>, vector<8x128xf32>,
    %c0_18 = arith.constant 0 : index
    %c0_19 = arith.constant 0 : index
    %35 = vector.load %arg6[%c0_18, %c0_19] : memref<8x128xf32, #tpu.memory_space<vmem>>, vector<8x128xf32>
    %36 = vector.shape_cast %24 : vector<16x128xf32> to vector<2x8x128xf32>
    %cst_20 = arith.constant dense<0.000000e+00> : vector<8x128xf32>
    %37 = vector.multi_reduction <add>, %36, %cst_20 [0] : vector<2x8x128xf32> to vector<8x128xf32>
    %38 = arith.addf %35, %37 : vector<8x128xf32>
    %c0_21 = arith.constant 0 : index
    %c0_22 = arith.constant 0 : index
    %39 = vector.load %arg6[%c0_21, %c0_22] : memref<8x128xf32, #tpu.memory_space<vmem>>, vector<8x128xf32>
    tpu.vector_store %arg6[%c0_21, %c0_22], %38 {strides = array<i32>} : memref<8x128xf32, #tpu.memory_space<vmem>>, vector<8x128xf32>,
    %c0_i32_23 = arith.constant 0 : i32
    %40 = arith.cmpi eq, %arg0, %c0_i32_23 : i32
    %41 = arith.extui %40 : i1 to i32
    %c0_i32_24 = arith.constant 0 : i32
    %42 = arith.cmpi ne, %41, %c0_i32_24 : i32
    scf.if %42 {
      %c0_25 = arith.constant 0 : index
      %c0_26 = arith.constant 0 : index
      %43 = vector.load %arg4[%c0_25, %c0_26] : memref<8x128xf32, #tpu.memory_space<vmem>>, vector<8x128xf32>
      %c0_27 = arith.constant 0 : index
      %c0_28 = arith.constant 0 : index
      %c0_29 = arith.constant 0 : index
      %c0_30 = arith.constant 0 : index
      %44 = vector.load %arg3[%c0_27, %c0_28, %c0_29, %c0_30] : memref<1x3x8x128xf32, #tpu.memory_space<vmem>>, vector<1x1x8x128xf32>
      %45 = vector.shape_cast %44 : vector<1x1x8x128xf32> to vector<8x128xf32>
      %46 = vector.shape_cast %43 : vector<8x128xf32> to vector<1x1x8x128xf32>
      tpu.vector_store %arg3[%c0_27, %c0_28, %c0_29, %c0_30], %46 {strides = array<i32>} : memref<1x3x8x128xf32, #tpu.memory_space<vmem>>, vector<1x1x8x128xf32>,
      %c0_31 = arith.constant 0 : index
      %c0_32 = arith.constant 0 : index
      %47 = vector.load %arg5[%c0_31, %c0_32] : memref<8x128xf32, #tpu.memory_space<vmem>>, vector<8x128xf32>
      %c0_33 = arith.constant 0 : index
      %c1 = arith.constant 1 : index
      %c0_34 = arith.constant 0 : index
      %c0_35 = arith.constant 0 : index
      %48 = vector.load %arg3[%c0_33, %c1, %c0_34, %c0_35] : memref<1x3x8x128xf32, #tpu.memory_space<vmem>>, vector<1x1x8x128xf32>
      %49 = vector.shape_cast %48 : vector<1x1x8x128xf32> to vector<8x128xf32>
      %50 = vector.shape_cast %47 : vector<8x128xf32> to vector<1x1x8x128xf32>
      tpu.vector_store %arg3[%c0_33, %c1, %c0_34, %c0_35], %50 {strides = array<i32>} : memref<1x3x8x128xf32, #tpu.memory_space<vmem>>, vector<1x1x8x128xf32>,
      %c0_36 = arith.constant 0 : index
      %c0_37 = arith.constant 0 : index
      %51 = vector.load %arg6[%c0_36, %c0_37] : memref<8x128xf32, #tpu.memory_space<vmem>>, vector<8x128xf32>
      %c0_38 = arith.constant 0 : index
      %c2 = arith.constant 2 : index
      %c0_39 = arith.constant 0 : index
      %c0_40 = arith.constant 0 : index
      %52 = vector.load %arg3[%c0_38, %c2, %c0_39, %c0_40] : memref<1x3x8x128xf32, #tpu.memory_space<vmem>>, vector<1x1x8x128xf32>
      %53 = vector.shape_cast %52 : vector<1x1x8x128xf32> to vector<8x128xf32>
      %54 = vector.shape_cast %51 : vector<8x128xf32> to vector<1x1x8x128xf32>
      tpu.vector_store %arg3[%c0_38, %c2, %c0_39, %c0_40], %54 {strides = array<i32>} : memref<1x3x8x128xf32, #tpu.memory_space<vmem>>, vector<1x1x8x128xf32>,
    } else {
    }
    return
  }
  func.func @transform_0(%arg0: i32) -> (i32, i32) {
    %c0_i32 = arith.constant 0 : i32
    %c0_i32_0 = arith.constant 0 : i32
    return %arg0, %c0_i32 : i32, i32
  }
  func.func @transform_1(%arg0: i32) -> (i32, i32) {
    %c0_i32 = arith.constant 0 : i32
    %c0_i32_0 = arith.constant 0 : i32
    return %arg0, %c0_i32 : i32, i32
  }
  func.func @transform_2(%arg0: i32) -> (i32, i32, i32, i32) {
    %c0_i32 = arith.constant 0 : i32
    %c0_i32_0 = arith.constant 0 : i32
    %c0_i32_1 = arith.constant 0 : i32
    %c0_i32_2 = arith.constant 0 : i32
    %c0_i32_3 = arith.constant 0 : i32
    return %c0_i32, %c0_i32_0, %c0_i32_1, %c0_i32_2 : i32, i32, i32, i32
  }
}

</mosaic_0001>

<llo_original>
// kernel: tpu_custom_call.1
$region0: #{tpu_custom_call.1}
  #allocation0 [shape = 'u32[]', space=smem, size = 0x4, offset = 0x4, fixed_abs, tag = 'smem constant byte address 0x4 - core index']
  #allocation1 [shape = 'u32[72,128]{1,0:T(1,128)}', space=vmem, size = 0x9000, scoped, tag = 'internal scratch']
  #allocation2 [shape = 'f32[8,128]{1,0:T(8,128)}', space=vmem, size = 0x1000, scoped, tag = 'scratch operand']
  #allocation3 [shape = 'f32[8,128]{1,0:T(8,128)}', space=vmem, size = 0x1000, scoped, tag = 'scratch operand']
  #allocation4 [shape = 'f32[8,128]{1,0:T(8,128)}', space=vmem, size = 0x1000, scoped, tag = 'scratch operand']
  %s0 = inlined_call_operand.hbm [shape: f32[16,128], index: 0, kind: input, shape index: {}]
  %s1 = inlined_call_operand.hbm [shape: f32[16,128], index: 1, kind: input, shape index: {}]
  %s2 = inlined_call_operand.hbm [shape: f32[1,3,8,128], index: 2, kind: output, shape index: {}]
  %s3 = sld [smem:[#allocation0]]
  $region34: #{tpu_custom_call.1} parent=0
    _
  %s5 = ssub.s32 1, %s3
  %s6 = scalar_select 0, %s5, %s3
  $region1: #{tpu_custom_call.1} parent=0
    #allocation5 [shape = 'u8[8192]{0}', space=vmem, size = 0x2000, scoped, tag = 'input window, operand 0, single buffered']
    #allocation6 [shape = 's32[1]{0}', space=sflag, size = 0x4, scoped, tag = 'scoped memory for tpu_custom_call.1']
    #allocation7 [shape = 's32[1]{0}', space=sflag, size = 0x4, scoped, tag = 'scoped memory for tpu_custom_call.1']
    #allocation8 [shape = 'u8[8192]{0}', space=vmem, size = 0x2000, scoped, tag = 'input window, operand 1, single buffered']
    #allocation9 [shape = 's32[1]{0}', space=sflag, size = 0x4, scoped, tag = 'scoped memory for tpu_custom_call.1']
    #allocation10 [shape = 'u8[12288]{0}', space=vmem, size = 0x3000, scoped, tag = 'output window, operand 0, single buffered']
    %7 = vsyncpa [#allocation6], 0
    %8 = vsyncpa [#allocation9], 0
    %9 = vsyncpa [#allocation7], 0
    // Predicated region
    $region2: #{tpu_custom_call.1} parent=1 // pred_check
      _
    $region3: #{tpu_custom_call.1} parent=1 // pred_check_branch
      %11 = sbr.rel (0) target = $region5
    $region4: #{tpu_custom_call.1} parent=1 // pred_region
      %13 = vsyncadd [#allocation6], 0
      %s14 = sshll.u32 %s0, 4
      %s15 = int_to_ptr.hbm [resolvable:$true] %s14
      %s16 = sshll.u32 [#allocation5], 4
      %s17 = int_to_ptr.vmem [resolvable:$true] %s16
      %22 = dma.hbm_to_vmem [thread:$0]  %s15, 256, %s17, [#allocation6], 128, 128, 8
    $region5: #{tpu_custom_call.1} parent=1 // pred_fallthru
      _
    // Predicated region
    $region6: #{tpu_custom_call.1} parent=1 // pred_check
      _
    $region7: #{tpu_custom_call.1} parent=1 // pred_check_branch
      %24 = sbr.rel (0) target = $region9
    $region8: #{tpu_custom_call.1} parent=1 // pred_region
      %26 = vsyncadd [#allocation9], 0
      %s27 = sshll.u32 %s1, 4
      %s28 = int_to_ptr.hbm [resolvable:$true] %s27
      %s29 = sshll.u32 [#allocation8], 4
      %s30 = int_to_ptr.vmem [resolvable:$true] %s29
      %35 = dma.hbm_to_vmem [thread:$0]  %s28, 256, %s30, [#allocation9], 128, 128, 8
    $region9: #{tpu_custom_call.1} parent=1 // pred_fallthru
      _
    // Predicated region
    $region10: #{tpu_custom_call.1} parent=1 // pred_check
      _
    $region11: #{tpu_custom_call.1} parent=1 // pred_check_branch
      %37 = sbr.rel (0) target = $region13
    $region12: #{tpu_custom_call.1} parent=1 // pred_region
      %39 = dma.done [#allocation6], 256
    $region13: #{tpu_custom_call.1} parent=1 // pred_fallthru
      _
    // Predicated region
    $region14: #{tpu_custom_call.1} parent=1 // pred_check
      _
    $region15: #{tpu_custom_call.1} parent=1 // pred_check_branch
      %41 = sbr.rel (0) target = $region17
    $region16: #{tpu_custom_call.1} parent=1 // pred_region
      %43 = dma.done [#allocation9], 256
    $region17: #{tpu_custom_call.1} parent=1 // pred_fallthru
      _
    %p44 = scmp.eq.s32.totalorder 0, 0
    // Predicated region
    $region18: #{tpu_custom_call.1} parent=1 // pred_check
      %p45 = pneg %p44
    $region19: #{tpu_custom_call.1} parent=1 // pred_check_branch
      %47 = sbr.rel (%p45) target = $region21
    $region20: #{tpu_custom_call.1} parent=1 // pred_region
      %48 = vst [vmem:[#allocation2] sm:$0xff] 0.0
      %49 = vst [vmem:[#allocation3] sm:$0xff] 0.0
      %50 = vst [vmem:[#allocation4] sm:$0xff] 0.0
    $region21: #{tpu_custom_call.1} parent=1 // pred_fallthru
      _
    %v51 = vld [vmem:[#allocation5] sm:$0xff]
    %v52 = vld [vmem:[#allocation5 + $0x8] sm:$0xff]
    %v53 = vld [vmem:[#allocation8] sm:$0xff]
    %v54 = vld [vmem:[#allocation8 + $0x8] sm:$0xff]
    %v55 = vand.u32 2147483647, %v51
    %v56 = vand.u32 2147483647, %v52
    %v57 = vsub.f32 0.0, %v55
    %v58 = vsub.f32 0.0, %v56
    %v59 = vmul.f32 %v57, 1.442695
    %v60 = vpow.pop %v59
    %v61 = vmul.f32 %v58, 1.442695
    %v62 = vpow.pop %v61
    %v63 = vadd.f32 %v60, 1.0
    %v64 = vlog2.pop %v63
    %v65 = vmul.f32 %v64, 0.6931472
    %v66 = vmul.f32 -0.5, %v60
    %v67 = vadd.f32 %v66, 1.0
    %v68 = vmul.f32 %v67, %v60
    %v69 = vand.u32 2147483647, %v60
    %vm70 = vcmp.lt.f32.partialorder %v69, 0.0004427343
    %v71 = vsel %vm70, %v68, %v65
    %v72 = vadd.f32 %v62, 1.0
    %v73 = vlog2.pop %v72
    %v74 = vmul.f32 %v73, 0.6931472
    %v75 = vmul.f32 -0.5, %v62
    %v76 = vadd.f32 %v75, 1.0
    %v77 = vmul.f32 %v76, %v62
    %v78 = vand.u32 2147483647, %v62
    %vm79 = vcmp.lt.f32.partialorder %v78, 0.0004427343
    %v80 = vsel %vm79, %v77, %v74
    %v81 = vmax.f32 %v51, 0.0
    %v82 = vmax.f32 %v52, 0.0
    %v83 = vmul.f32 %v51, %v53
    %v84 = vmul.f32 %v52, %v54
    %v85 = vsub.f32 %v81, %v83
    %v86 = vsub.f32 %v82, %v84
    %v87 = vadd.f32 %v85, %v71
    %v88 = vadd.f32 %v86, %v80
    %v89 = vadd.f32 %v60, 1.0
    %v90 = vadd.f32 %v62, 1.0
    %v91 = vrcp.pop %v89
    %v92 = vmul.f32 %v89, %v91
    %v93 = vsub.f32 1.0, %v92
    %v94 = vmul.f32 %v91, %v93
    %v95 = vadd.f32 %v91, %v94
    %vm96 = vweird.f32 %v89
    %vm97 = vweird.f32 %v91
    %vm98 = vmor %vm96, %vm97
    %v99 = vsel %vm98, %v91, %v95
    %v100 = vand.u32 2147483647, %v89
    %vm101 = vcmp.eq.f32.partialorder %v100, 8.507059e+37
    %v102 = vand.u32 %v89, 2147483648
    %v103 = vor.u32 1.1754944e-38, %v102
    %v104 = vsel %vm101, %v103, %v99
    %v105 = vmul.f32 1.0, %v104
    %v106 = vrcp.pop %v90
    %v107 = vmul.f32 %v90, %v106
    %v108 = vsub.f32 1.0, %v107
    %v109 = vmul.f32 %v106, %v108
    %v110 = vadd.f32 %v106, %v109
    %vm111 = vweird.f32 %v90
    %vm112 = vweird.f32 %v106
    %vm113 = vmor %vm111, %vm112
    %v114 = vsel %vm113, %v106, %v110
    %v115 = vand.u32 2147483647, %v90
    %vm116 = vcmp.eq.f32.partialorder %v115, 8.507059e+37
    %v117 = vand.u32 %v90, 2147483648
    %v118 = vor.u32 1.1754944e-38, %v117
    %v119 = vsel %vm116, %v118, %v114
    %v120 = vmul.f32 1.0, %v119
    %vm121 = vcmp.ge.f32.partialorder %v51, 0.0
    %vm122 = vcmp.ge.f32.partialorder %v52, 0.0
    %v123 = vmul.f32 %v60, %v105
    %v124 = vmul.f32 %v62, %v120
    %v125 = vsel %vm121, %v105, %v123
    %v126 = vsel %vm122, %v120, %v124
    %v127 = vmul.f32 %v125, %v53
    %v128 = vmul.f32 %v126, %v54
    %v129 = vadd.f32 %v125, %v53
    %v130 = vadd.f32 %v126, %v54
    %v131 = vld [vmem:[#allocation2] sm:$0xff]
    %v132 = vadd.f32 %v87, %v88
    %v133 = vadd.f32 %v131, %v132
    %134 = vst [vmem:[#allocation2] sm:$0xff] %v133
    %v135 = vld [vmem:[#allocation3] sm:$0xff]
    %v136 = vadd.f32 %v127, %v128
    %v137 = vadd.f32 %v135, %v136
    %138 = vst [vmem:[#allocation3] sm:$0xff] %v137
    %v139 = vld [vmem:[#allocation4] sm:$0xff]
    %v140 = vadd.f32 %v129, %v130
    %v141 = vadd.f32 %v139, %v140
    %142 = vst [vmem:[#allocation4] sm:$0xff] %v141
    // Predicated region
    $region22: #{tpu_custom_call.1} parent=1 // pred_check
      %p143 = pneg %p44
    $region23: #{tpu_custom_call.1} parent=1 // pred_check_branch
      %145 = sbr.rel (%p143) target = $region25
    $region24: #{tpu_custom_call.1} parent=1 // pred_region
      %v146 = vld [vmem:[#allocation2] sm:$0xff]
      %147 = vst [vmem:[#allocation10] sm:$0xff] %v146
      %v148 = vld [vmem:[#allocation3] sm:$0xff]
      %s149 = scalar_lea.vmem [#allocation10], 8
      %150 = vst [vmem:[%s149] sm:$0xff] %v148
      %v151 = vld [vmem:[#allocation4] sm:$0xff]
      %s152 = scalar_lea.vmem [#allocation10], 16
      %153 = vst [vmem:[%s152] sm:$0xff] %v151
    $region25: #{tpu_custom_call.1} parent=1 // pred_fallthru
      _
    // Predicated region
    $region26: #{tpu_custom_call.1} parent=1 // pred_check
      _
    $region27: #{tpu_custom_call.1} parent=1 // pred_check_branch
      %155 = sbr.rel (0) target = $region29
    $region28: #{tpu_custom_call.1} parent=1 // pred_region
      %157 = vsyncadd [#allocation7], 0
      %s158 = sshll.u32 [#allocation10], 4
      %s159 = int_to_ptr.vmem [resolvable:$true] %s158
      %s160 = sshll.u32 %s2, 4
      %s161 = int_to_ptr.hbm [resolvable:$true] %s160
      %166 = dma.vmem_to_hbm [thread:$0]  %s159, 384, %s161, [#allocation7], 128, 128, 8
    $region29: #{tpu_custom_call.1} parent=1 // pred_fallthru
      _
    // Predicated region
    $region30: #{tpu_custom_call.1} parent=1 // pred_check
      _
    $region31: #{tpu_custom_call.1} parent=1 // pred_check_branch
      %168 = sbr.rel (0) target = $region33
    $region32: #{tpu_custom_call.1} parent=1 // pred_region
      %170 = dma.done [#allocation7], 384
    $region33: #{tpu_custom_call.1} parent=1 // pred_fallthru
      _
    %171 = vsyncpa [#allocation6], 1
    %172 = vsyncpa [#allocation9], 1
    %173 = vsyncpa [#allocation7], 1

</llo_original>
